<compile_context>
chip_gen: v6e
topology: v6e:2x2x1
jax: 0.10.0
libtpu: 0.0.40
codegen_flags: <defaults>
</compile_context>

<pallas_src>
import functools

import jax
import jax.numpy as jnp
from jax.experimental import pallas as pl
from jax.experimental.pallas import tpu as pltpu

_LANES = 128                         # slab lane width (full vreg -> unmasked vst)
_REDUCE_BLOCK_BYTES = 4 * 1024 * 1024  # per-operand block for mean/sum
_NONE_BLOCK_BYTES = 2 * 1024 * 1024    # per-operand block for reduction='none'
_VMEM_LIMIT_BYTES = 32 * 1024 * 1024   # explicit scoped-VMEM limit (safe on all gens)


def _round_up(a, b):
    return ((a + b - 1) // b) * b


def _sublane_tile(dtype):
    """Packed-sublane tile rows: f32 -> 8, bf16 -> 16, int8/fp8 -> 32."""
    itemsize = jnp.dtype(dtype).itemsize
    return 8 * max(1, 4 // itemsize)


def _block_rows_for(rows, dtype, cap_bytes):
    """Dtype-aware block rows: bytes-capped, rounded to the packed-sublane tile."""
    sub = _sublane_tile(dtype)
    itemsize = jnp.dtype(dtype).itemsize
    cap_rows = max(sub, (cap_bytes // (_LANES * itemsize)) // sub * sub)
    return min(cap_rows, _round_up(rows, sub))


# ---------------------------------------------------------------------------
# Kernels
# ---------------------------------------------------------------------------
def _mse_sum_kernel(x_ref, y_ref, o_ref, acc_ref, *,
                    block_rows, steps, rows_total, scale, needs_mask):
    """Per-split, already-scaled per-lane partial sums of (x - y)^2.

    Grid = (nsplit, steps): axis 0 is 'parallel' (megacore split), axis 1 is the
    'arbitrary' reduction axis.  o_ref is a (1, 8, 128) f32 block holding
    scale * sum(d^2) over this split's rows.  Duplicated blocks (from the
    clamped index_map when num_blocks is odd) and partial tail blocks are
    zeroed via the row-index mask, which only runs on those blocks.
    """
    s = pl.program_id(1)

    @pl.when(s == 0)
    def _():
        acc_ref[...] = jnp.zeros_like(acc_ref)

    d = x_ref[...].astype(jnp.float32) - y_ref[...].astype(jnp.float32)
    d2 = d * d

    def _accum(vals):
        # Collapse (block_rows, 128) -> (8, 128): pure VPU adds into one
        # resident vreg; the cross-lane reduce of the tiny per-lane partials is
        # deferred to the wrapper.
        acc_ref[...] += jnp.sum(vals.reshape(block_rows // 8, 8, _LANES), axis=0)

    if needs_mask:
        # Logical (unclamped) global block id; the DMA index_map clamps to a
        # valid block, the mask here zeroes any duplicated / overrun rows.
        gb = pl.program_id(0) * steps + s
        is_tail = (gb + 1) * block_rows > rows_total

        @pl.when(is_tail)
        def _():
            rid = gb * block_rows + jax.lax.broadcasted_iota(jnp.int32, d2.shape, 0)
            _accum(jnp.where(rid < rows_total, d2, 0.0))

        @pl.when(jnp.logical_not(is_tail))
        def _():
            _accum(d2)
    else:
        _accum(d2)

    @pl.when(s == pl.num_programs(1) - 1)
    def _():
        # Fused loss_weight (and 1/n for "mean") scaling in the epilogue.
        o_ref[...] = (acc_ref[...] * jnp.float32(scale))[None, :, :]


def _mse_none_kernel(x_ref, y_ref, o_ref, *, loss_weight):
    d = x_ref[...].astype(jnp.float32) - y_ref[...].astype(jnp.float32)
    o_ref[...] = (jnp.float32(loss_weight) * (d * d)).astype(o_ref.dtype)


# ---------------------------------------------------------------------------
# Wrapper
# ---------------------------------------------------------------------------
def _as_slab(x):
    """Flatten to a lane-dense (R, 128) slab.

    Pure reshape (no copy) when numel % 128 == 0; otherwise a small zero-pad
    fallback (padded zeros contribute 0 to the sum and are sliced off for
    reduction='none').
    """
    n = x.size
    flat = x.reshape(-1)
    if n % _LANES != 0:
        flat = jnp.pad(flat, (0, _LANES - n % _LANES))
    return flat.reshape(flat.size // _LANES, _LANES), n


@functools.partial(jax.jit,
                   static_argnames=("reduction", "loss_weight", "block_cap_bytes"))
def mse_loss(cls_score, reg_label, reduction="mean", loss_weight=1.0,
             block_cap_bytes=None):
    assert cls_score.shape == reg_label.shape, \
        "shapes must match (nn.MSELoss does not broadcast here)"
    orig_shape = cls_score.shape
    orig_dtype = cls_score.dtype

    x2d, n = _as_slab(cls_score)
    y2d, _ = _as_slab(reg_label)
    R = x2d.shape[0]

    if reduction == "none":
        cap = _NONE_BLOCK_BYTES if block_cap_bytes is None else int(block_cap_bytes)
        block_rows = _block_rows_for(R, orig_dtype, cap)
        num_blocks = pl.cdiv(R, block_rows)
        out2d = pl.pallas_call(
            functools.partial(_mse_none_kernel, loss_weight=float(loss_weight)),
            out_shape=jax.ShapeDtypeStruct((R, _LANES), orig_dtype),
            grid_spec=pltpu.PrefetchScalarGridSpec(
                num_scalar_prefetch=0,
                grid=(num_blocks,),
                in_specs=[pl.BlockSpec((block_rows, _LANES), lambda i: (i, 0)),
                          pl.BlockSpec((block_rows, _LANES), lambda i: (i, 0))],
                out_specs=pl.BlockSpec((block_rows, _LANES), lambda i: (i, 0)),
            ),
            compiler_params=pltpu.CompilerParams(
                dimension_semantics=("parallel",),
                vmem_limit_bytes=_VMEM_LIMIT_BYTES),
        )(x2d, y2d)
        if n == R * _LANES:                       # common case: no extra copies
            return out2d.reshape(orig_shape)
        return out2d.reshape(-1)[:n].reshape(orig_shape)   # rare fallback slice

    if reduction not in ("mean", "sum"):
        raise ValueError(f"unsupported reduction: {reduction}")

    cap = _REDUCE_BLOCK_BYTES if block_cap_bytes is None else int(block_cap_bytes)
    block_rows = _block_rows_for(R, orig_dtype, cap)
    num_blocks = pl.cdiv(R, block_rows)

    # Unconditional 2-way split on the leading 'parallel' axis whenever there is
    # more than one block (both v7x TensorCores reduce half the slab; a no-op on
    # single-core v5e/v6e).  Odd block counts: core 1's last logical block is
    # clamped to a valid block index for the DMA and fully masked in-kernel.
    nsplit = 2 if num_blocks >= 2 else 1
    steps = pl.cdiv(num_blocks, nsplit)
    needs_mask = (nsplit * steps * block_rows != R)
    scale = float(loss_weight) / float(n) if reduction == "mean" else float(loss_weight)

    last_block = num_blocks - 1

    def in_index_map(c, s):
        # Clamp so duplicated (out-of-range) logical blocks DMA a valid block;
        # the kernel's row mask zeroes their contribution.
        return (jnp.minimum(c * steps + s, last_block), 0)

    kernel = functools.partial(
        _mse_sum_kernel,
        block_rows=block_rows, steps=steps, rows_total=R,
        scale=scale, needs_mask=needs_mask)

    partials = pl.pallas_call(
        kernel,
        out_shape=jax.ShapeDtypeStruct((nsplit, 8, _LANES), jnp.float32),
        grid_spec=pltpu.PrefetchScalarGridSpec(
            num_scalar_prefetch=0,
            grid=(nsplit, steps),
            in_specs=[pl.BlockSpec((block_rows, _LANES), in_index_map),
                      pl.BlockSpec((block_rows, _LANES), in_index_map)],
            out_specs=pl.BlockSpec((1, 8, _LANES), lambda c, s: (c, 0, 0)),
            scratch_shapes=[pltpu.VMEM((8, _LANES), jnp.float32)],
        ),
        compiler_params=pltpu.CompilerParams(
            dimension_semantics=("parallel", "arbitrary"),
            vmem_limit_bytes=_VMEM_LIMIT_BYTES),
    )(x2d, y2d)

    # Tiny final cross-lane reduce (<= nsplit*8*128 f32) of the scaled partials.
    # (Kept host-side in one small XLA fusion; an in-kernel scalar epilogue to a
    # (1,1) block would violate the (8,128) block constraint for no real gain.)
    loss = jnp.sum(partials)
    # Note: the reduced scalar is cast back to the input dtype (matches torch's
    # output dtype); negligible precision delta for bf16 inputs.
    return loss.astype(orig_dtype)


class MSELoss:
    """JAX/Pallas port of mmcls MSELoss (forward only)."""

    def __init__(self, reduction="mean", loss_weight=1.0, loss_name="mse_loss"):
        self.reduction = reduction
        self.loss_weight = loss_weight
        self.loss_name = loss_name

    def get_name(self):
        return "MSE_loss"

    def __call__(self, cls_score, reg_label, **kwargs):
        return mse_loss(cls_score, reg_label,
                        reduction=self.reduction,
                        loss_weight=self.loss_weight)


# ---------------------------------------------------------------------------
if __name__ == "__main__":
    key = jax.random.PRNGKey(0)
    k1, k2 = jax.random.split(key)
    # NCHW-shaped regression scores / labels (layout-agnostic for MSE).
    x = jax.random.normal(k1, (2, 4, 16, 16), dtype=jnp.float32)
    y = jax.random.normal(k2, (2, 4, 16, 16), dtype=jnp.float32)

    # mean reduction (default), with a non-trivial loss_weight
    loss_mod = MSELoss(reduction="mean", loss_weight=0.5)
    loss = jax.block_until_ready(loss_mod(x, y))
    ref = 0.5 * jnp.mean((x - y) ** 2)
    assert jnp.allclose(loss, ref, rtol=1e-5, atol=1e-6), (loss, ref)

    # sum reduction
    loss_sum = jax.block_until_ready(MSELoss(reduction="sum")(x, y))
    assert jnp.allclose(loss_sum, jnp.sum((x - y) ** 2), rtol=1e-5, atol=1e-4)

    # none reduction (elementwise)
    loss_none = jax.block_until_ready(MSELoss(reduction="none", loss_weight=2.0)(x, y))
    assert loss_none.shape == x.shape
    assert jnp.allclose(loss_none, 2.0 * (x - y) ** 2, rtol=1e-5, atol=1e-6)

    # unaligned shape: exercises the pad fallback + in-kernel tail masking
    x2 = jax.random.normal(k1, (3, 5, 7), dtype=jnp.float32)
    y2 = jax.random.normal(k2, (3, 5, 7), dtype=jnp.float32)
    l2 = jax.block_until_ready(MSELoss(reduction="mean")(x2, y2))
    assert jnp.allclose(l2, jnp.mean((x2 - y2) ** 2), rtol=1e-5, atol=1e-6)
    l2n = jax.block_until_ready(MSELoss(reduction="none")(x2, y2))
    assert l2n.shape == x2.shape
    assert jnp.allclose(l2n, (x2 - y2) ** 2, rtol=1e-5, atol=1e-6)

    # bf16 inputs: exercises the dtype-aware (16-row sublane tile) block sizing
    xb = jax.random.normal(k1, (4, 8, 64), dtype=jnp.bfloat16)
    yb = jax.random.normal(k2, (4, 8, 64), dtype=jnp.bfloat16)
    lb = jax.block_until_ready(MSELoss(reduction="mean")(xb, yb))
    refb = jnp.mean((xb.astype(jnp.float32) - yb.astype(jnp.float32)) ** 2)
    assert jnp.allclose(lb.astype(jnp.float32), refb, rtol=2e-2), (lb, refb)

    # forced tiny blocks (16 f32 rows) -> num_blocks=3: exercises the
    # unconditional 2-way split with a clamped duplicate block + partial tail.
    x3 = jax.random.normal(k1, (40, 128), dtype=jnp.float32)
    y3 = jax.random.normal(k2, (40, 128), dtype=jnp.float32)
    cap = 16 * _LANES * 4
    l3s = jax.block_until_ready(
        mse_loss(x3, y3, reduction="sum", loss_weight=1.0, block_cap_bytes=cap))
    assert jnp.allclose(l3s, jnp.sum((x3 - y3) ** 2), rtol=5e-5, atol=1e-3)
    l3m = jax.block_until_ready(
        mse_loss(x3, y3, reduction="mean", loss_weight=1.0, block_cap_bytes=cap))
    assert jnp.allclose(l3m, jnp.mean((x3 - y3) ** 2), rtol=1e-5, atol=1e-6)

    print("KERNEL_OK")
</pallas_src>

<mosaic_0001>
module attributes {stable_mosaic.version = 11 : i64} {
  func.func @_mse_sum_kernel(%arg0: i32, %arg1: i32, %arg2: memref<16x128xf32, #tpu.memory_space<vmem>>, %arg3: memref<16x128xf32, #tpu.memory_space<vmem>>, %arg4: memref<1x8x128xf32, #tpu.memory_space<vmem>>, %arg5: memref<8x128xf32, #tpu.memory_space<vmem>>) attributes {dimension_semantics = [#tpu.dimension_semantics<parallel>, #tpu.dimension_semantics<arbitrary>], iteration_bounds = array<i64: 1, 1>, scalar_prefetch = 0 : i64, scratch_operands = 1 : i64, tpu.core_type = #tpu.core_type<tc>, window_params = [{transform_indices = @transform_0, window_bounds = array<i64: 16, 128>}, {transform_indices = @transform_1, window_bounds = array<i64: 16, 128>}, {transform_indices = @transform_2, window_bounds = array<i64: 1, 8, 128>}]} {
    %c0_i32 = arith.constant 0 : i32
    %0 = arith.cmpi eq, %arg1, %c0_i32 : i32
    %1 = arith.extui %0 : i1 to i32
    %c0_i32_0 = arith.constant 0 : i32
    %2 = arith.cmpi ne, %1, %c0_i32_0 : i32
    scf.if %2 {
      %cst_10 = arith.constant 0.000000e+00 : f32
      %15 = vector.broadcast %cst_10 : f32 to vector<8x128xf32>
      %c0_11 = arith.constant 0 : index
      %c0_12 = arith.constant 0 : index
      %16 = vector.load %arg5[%c0_11, %c0_12] : memref<8x128xf32, #tpu.memory_space<vmem>>, vector<8x128xf32>
      tpu.vector_store %arg5[%c0_11, %c0_12], %15 {strides = array<i32>} : memref<8x128xf32, #tpu.memory_space<vmem>>, vector<8x128xf32>,
    } else {
    }
    %c0 = arith.constant 0 : index
    %c0_1 = arith.constant 0 : index
    %3 = vector.load %arg2[%c0, %c0_1] : memref<16x128xf32, #tpu.memory_space<vmem>>, vector<16x128xf32>
    %c0_2 = arith.constant 0 : index
    %c0_3 = arith.constant 0 : index
    %4 = vector.load %arg3[%c0_2, %c0_3] : memref<16x128xf32, #tpu.memory_space<vmem>>, vector<16x128xf32>
    %5 = arith.subf %3, %4 : vector<16x128xf32>
    %6 = arith.mulf %5, %5 : vector<16x128xf32>
    %c0_4 = arith.constant 0 : index
    %c0_5 = arith.constant 0 : index
    %7 = vector.load %arg5[%c0_4, %c0_5] : memref<8x128xf32, #tpu.memory_space<vmem>>, vector<8x128xf32>
    %8 = vector.shape_cast %6 : vector<16x128xf32> to vector<2x8x128xf32>
    %cst = arith.constant dense<0.000000e+00> : vector<8x128xf32>
    %9 = vector.multi_reduction <add>, %8, %cst [0] : vector<2x8x128xf32> to vector<8x128xf32>
    %10 = arith.addf %7, %9 : vector<8x128xf32>
    %c0_6 = arith.constant 0 : index
    %c0_7 = arith.constant 0 : index
    %11 = vector.load %arg5[%c0_6, %c0_7] : memref<8x128xf32, #tpu.memory_space<vmem>>, vector<8x128xf32>
    tpu.vector_store %arg5[%c0_6, %c0_7], %10 {strides = array<i32>} : memref<8x128xf32, #tpu.memory_space<vmem>>, vector<8x128xf32>,
    %c0_i32_8 = arith.constant 0 : i32
    %12 = arith.cmpi eq, %arg1, %c0_i32_8 : i32
    %13 = arith.extui %12 : i1 to i32
    %c0_i32_9 = arith.constant 0 : i32
    %14 = arith.cmpi ne, %13, %c0_i32_9 : i32
    scf.if %14 {
      %c0_10 = arith.constant 0 : index
      %c0_11 = arith.constant 0 : index
      %15 = vector.load %arg5[%c0_10, %c0_11] : memref<8x128xf32, #tpu.memory_space<vmem>>, vector<8x128xf32>
      %cst_12 = arith.constant 2.44140625E-4 : f32
      %16 = vector.broadcast %cst_12 : f32 to vector<8x128xf32>
      %17 = arith.mulf %15, %16 : vector<8x128xf32>
      %18 = vector.shape_cast %17 : vector<8x128xf32> to vector<1x8x128xf32>
      %c0_13 = arith.constant 0 : index
      %c0_14 = arith.constant 0 : index
      %c0_15 = arith.constant 0 : index
      %19 = vector.load %arg4[%c0_13, %c0_14, %c0_15] : memref<1x8x128xf32, #tpu.memory_space<vmem>>, vector<1x8x128xf32>
      tpu.vector_store %arg4[%c0_13, %c0_14, %c0_15], %18 {strides = array<i32>} : memref<1x8x128xf32, #tpu.memory_space<vmem>>, vector<1x8x128xf32>,
    } else {
    }
    return
  }
  func.func @transform_0(%arg0: i32, %arg1: i32) -> (i32, i32) {
    %c1_i32 = arith.constant 1 : i32
    %0 = arith.muli %arg0, %c1_i32 : i32
    %1 = arith.addi %0, %arg1 : i32
    %c0_i32 = arith.constant 0 : i32
    %2 = arith.minsi %1, %c0_i32 : i32
    %c0_i32_0 = arith.constant 0 : i32
    %c0_i32_1 = arith.constant 0 : i32
    return %2, %c0_i32_0 : i32, i32
  }
  func.func @transform_1(%arg0: i32, %arg1: i32) -> (i32, i32) {
    %c1_i32 = arith.constant 1 : i32
    %0 = arith.muli %arg0, %c1_i32 : i32
    %1 = arith.addi %0, %arg1 : i32
    %c0_i32 = arith.constant 0 : i32
    %2 = arith.minsi %1, %c0_i32 : i32
    %c0_i32_0 = arith.constant 0 : i32
    %c0_i32_1 = arith.constant 0 : i32
    return %2, %c0_i32_0 : i32, i32
  }
  func.func @transform_2(%arg0: i32, %arg1: i32) -> (i32, i32, i32) {
    %c0_i32 = arith.constant 0 : i32
    %c0_i32_0 = arith.constant 0 : i32
    %c0_i32_1 = arith.constant 0 : i32
    return %arg0, %c0_i32, %c0_i32_0 : i32, i32, i32
  }
}

</mosaic_0001>

<llo_original>
// kernel: mse_loss.1
$region0: #{mse_loss.1}
  #allocation0 [shape = 'u32[]', space=smem, size = 0x4, offset = 0x4, fixed_abs, tag = 'smem constant byte address 0x4 - core index']
  #allocation1 [shape = 'u32[144,128]{1,0:T(1,128)}', space=vmem, size = 0x12000, scoped, tag = 'internal scratch']
  #allocation2 [shape = 'f32[8,128]{1,0:T(8,128)}', space=vmem, size = 0x1000, scoped, tag = 'scratch operand']
  %s0 = inlined_call_operand.vmem [shape: f32[16,128], index: 0, kind: input, shape index: {}]
  %s1 = inlined_call_operand.vmem [shape: f32[16,128], index: 1, kind: input, shape index: {}]
  %s2 = inlined_call_operand.vmem [shape: f32[1,8,128], index: 2, kind: output, shape index: {}]
  %s3 = sld [smem:[#allocation0]]
  $region26: #{mse_loss.1} parent=0
    _
  %s5 = ssub.s32 1, %s3
  %s6 = scalar_select 0, %s5, %s3
  // Predicated region
  $region2: #{mse_loss.1} parent=0 // pred_check
    _
  $region3: #{mse_loss.1} parent=0 // pred_check_branch
    %8 = sbr.rel (0) target = $region5
  $region4: #{mse_loss.1} parent=0 // pred_region
    %s9 = sadd.s32 0, 0
    %p10 = scmp.lt.s32.totalorder %s9, 0
    %s11 = scalar_select %p10, %s9, 0
    %s12 = smul.u32 2, %s11
    %p13 = scmp.lt.s32.totalorder %s12, 1
    %s14 = scalar_select %p13, %s12, 1
    %s15 = smul.addr %s14, 8
    %s16 = scalar_lea.vmem %s0, %s15
    %s17 = sadd.s32 0, 0
    %p18 = scmp.lt.s32.totalorder %s17, 0
    %s19 = scalar_select %p18, %s17, 0
    %s20 = smul.u32 2, %s19
  $region5: #{mse_loss.1} parent=0 // pred_fallthru
    _
  // Predicated region
  $region6: #{mse_loss.1} parent=0 // pred_check
    _
  $region7: #{mse_loss.1} parent=0 // pred_check_branch
    %22 = sbr.rel (0) target = $region9
  $region8: #{mse_loss.1} parent=0 // pred_region
    %s23 = sadd.s32 0, 0
    %p24 = scmp.lt.s32.totalorder %s23, 0
    %s25 = scalar_select %p24, %s23, 0
    %s26 = smul.u32 2, %s25
    %p27 = scmp.lt.s32.totalorder %s26, 1
    %s28 = scalar_select %p27, %s26, 1
    %s29 = smul.addr %s28, 8
    %s30 = scalar_lea.vmem %s1, %s29
    %s31 = sadd.s32 0, 0
    %p32 = scmp.lt.s32.totalorder %s31, 0
    %s33 = scalar_select %p32, %s31, 0
    %s34 = smul.u32 2, %s33
  $region9: #{mse_loss.1} parent=0 // pred_fallthru
    _
  %s35 = sadd.s32 0, 0
  %p36 = scmp.lt.s32.totalorder %s35, 0
  %s37 = scalar_select %p36, %s35, 0
  %s38 = smul.u32 2, %s37
  %p39 = scmp.lt.s32.totalorder %s38, 1
  %s40 = scalar_select %p39, %s38, 1
  %s41 = smul.addr %s40, 8
  %s42 = scalar_lea.vmem %s0, %s41
  %s43 = sadd.s32 0, 0
  %p44 = scmp.lt.s32.totalorder %s43, 0
  %s45 = scalar_select %p44, %s43, 0
  %s46 = smul.u32 2, %s45
  %p47 = scmp.lt.s32.totalorder %s46, 1
  %s48 = scalar_select %p47, %s46, 1
  %s49 = smul.addr %s48, 8
  %s50 = scalar_lea.vmem %s1, %s49
  %s51 = sadd.s32 0, 0
  %p52 = scmp.lt.s32.totalorder %s51, 0
  %s53 = scalar_select %p52, %s51, 0
  %s54 = smul.u32 2, %s53
  %p55 = scmp.lt.s32.totalorder %s54, 1
  %s56 = scalar_select %p55, %s54, 1
  %s57 = smul.addr %s56, 8
  %s58 = scalar_lea.vmem %s0, %s57
  %s59 = sadd.s32 0, 0
  %p60 = scmp.lt.s32.totalorder %s59, 0
  %s61 = scalar_select %p60, %s59, 0
  %s62 = smul.u32 2, %s61
  %s63 = sadd.s32 0, 0
  %p64 = scmp.lt.s32.totalorder %s63, 0
  %s65 = scalar_select %p64, %s63, 0
  %s66 = smul.u32 2, %s65
  %p67 = scmp.lt.s32.totalorder %s66, 1
  %s68 = scalar_select %p67, %s66, 1
  %s69 = smul.addr %s68, 8
  %s70 = scalar_lea.vmem %s1, %s69
  %s71 = sadd.s32 0, 0
  %p72 = scmp.lt.s32.totalorder %s71, 0
  %s73 = scalar_select %p72, %s71, 0
  %s74 = smul.u32 2, %s73
  %p75 = scmp.eq.s32.totalorder 0, 0
  // Predicated region
  $region10: #{mse_loss.1} parent=0 // pred_check
    %p76 = pneg %p75
  $region11: #{mse_loss.1} parent=0 // pred_check_branch
    %78 = sbr.rel (%p76) target = $region13
  $region12: #{mse_loss.1} parent=0 // pred_region
    %79 = vst [vmem:[#allocation2] sm:$0xff] 0.0
  $region13: #{mse_loss.1} parent=0 // pred_fallthru
    _
  %v80 = vld [vmem:[%s58] sm:$0xff]
  %v81 = vld [vmem:[%s58 + $0x8] sm:$0xff]
  %v82 = vld [vmem:[%s70] sm:$0xff]
  %v83 = vld [vmem:[%s70 + $0x8] sm:$0xff]
  %v84 = vsub.f32 %v80, %v82
  %v85 = vsub.f32 %v81, %v83
  %v86 = vmul.f32 %v84, %v84
  %v87 = vmul.f32 %v85, %v85
  %v88 = vld [vmem:[#allocation2] sm:$0xff]
  %v89 = vadd.f32 %v86, %v87
  %v90 = vadd.f32 %v88, %v89
  %91 = vst [vmem:[#allocation2] sm:$0xff] %v90
  // Predicated region
  $region14: #{mse_loss.1} parent=0 // pred_check
    %p92 = pneg %p75
  $region15: #{mse_loss.1} parent=0 // pred_check_branch
    %94 = sbr.rel (%p92) target = $region17
  $region16: #{mse_loss.1} parent=0 // pred_region
    %v95 = vld [vmem:[#allocation2] sm:$0xff]
    %v96 = vmul.f32 %v95, 0.00024414063
    %97 = vst [vmem:[%s2] sm:$0xff] %v96
  $region17: #{mse_loss.1} parent=0 // pred_fallthru
    _
  // Predicated region
  $region18: #{mse_loss.1} parent=0 // pred_check
    _
  $region19: #{mse_loss.1} parent=0 // pred_check_branch
    %99 = sbr.rel (0) target = $region21
  $region20: #{mse_loss.1} parent=0 // pred_region
    _
  $region21: #{mse_loss.1} parent=0 // pred_fallthru
    _
  // Predicated region
  $region22: #{mse_loss.1} parent=0 // pred_check
    _
  $region23: #{mse_loss.1} parent=0 // pred_check_branch
    %101 = sbr.rel (0) target = $region25
  $region24: #{mse_loss.1} parent=0 // pred_region
    _
  $region25: #{mse_loss.1} parent=0 // pred_fallthru
    _

</llo_original>
